<compile_context>
chip_gen: v7x
topology: tpu7x:2x2x1
jax: 0.10.0
libtpu: 0.0.40
codegen_flags: <defaults>
</compile_context>

<pallas_src>
import jax
import jax.numpy as jnp
from jax import lax
from jax.experimental import pallas as pl
from jax.experimental.pallas import tpu as pltpu


def _row_kl_mean(logits, labels):
    """(TR, W) -> (TR, 1): mean over W of KLDivLoss(log_softmax(logits), labels)."""
    logits = logits.astype(jnp.float32)
    labels = labels.astype(jnp.float32)
    # log_softmax over the bin axis (lanes), max-stabilized.
    m = jnp.max(logits, axis=-1, keepdims=True)
    z = logits - m
    log_p = z - jnp.log(jnp.sum(jnp.exp(z), axis=-1, keepdims=True))
    # PyTorch KLDivLoss(reduction='none'): where(t > 0, t * (log t - log_p), 0).
    # t == 0 elements already contribute exactly 0 through the multiply, so one
    # select (on log t) is enough.
    safe_log_t = jnp.where(labels > 0, jnp.log(labels), 0.0)
    kl = labels * (safe_log_t - log_p)
    return jnp.mean(kl, axis=-1, keepdims=True)


def _make_kernel(num_rows, tile_rows, use_weight):
    """Kernel over one row tile; emits a lane-dense (1, 128) partial sum."""

    def _compute(w_ref, ox_ref, oy_ref, tx_ref, ty_ref, out_ref):
        i = pl.program_id(0)
        row_val = (_row_kl_mean(ox_ref[...], tx_ref[...]) +
                   _row_kl_mean(oy_ref[...], ty_ref[...]))            # (TR, 1)
        if use_weight:
            row_val = row_val * w_ref[...].astype(jnp.float32)        # (TR, 1)
        # Rows past the logical end (ragged last tile) contain undefined data:
        # zero them *after* the multiply so NaN/Inf garbage cannot leak in.
        row_ids = i * tile_rows + lax.broadcasted_iota(
            jnp.int32, (tile_rows, 1), 0)
        row_val = jnp.where(row_ids < num_rows, row_val, 0.0)
        partial = jnp.sum(row_val, axis=0, keepdims=True)             # (1, 1)
        out_ref[...] = jnp.broadcast_to(partial, out_ref.shape)       # (1, 128)

    if use_weight:
        def kernel(w_ref, ox_ref, oy_ref, tx_ref, ty_ref, out_ref):
            _compute(w_ref, ox_ref, oy_ref, tx_ref, ty_ref, out_ref)
    else:
        def kernel(ox_ref, oy_ref, tx_ref, ty_ref, out_ref):
            _compute(None, ox_ref, oy_ref, tx_ref, ty_ref, out_ref)
    return kernel


def kl_discret_loss_simcc(output_x, output_y, target_x, target_y,
                          target_weight=None, use_target_weight=True,
                          tile_rows=None):
    """PyTorch-layout inputs:
       output_x/target_x: (N, K, Wx); output_y/target_y: (N, K, Wy);
       target_weight: (N, K). Returns scalar f32 loss."""
    N, K, Wx = output_x.shape
    Wy = output_y.shape[-1]
    R = N * K

    # Flat (row, bins) views — contiguous reshapes, zero extra HBM traffic.
    ox = output_x.reshape(R, Wx)
    oy = output_y.reshape(R, Wy)
    tx = target_x.reshape(R, Wx)
    ty = target_y.reshape(R, Wy)

    if tile_rows is None:
        itemsize = max(jnp.dtype(output_x.dtype).itemsize,
                       jnp.dtype(target_x.dtype).itemsize)
        # 4 big tiles + padded weight tile, double-buffered by the pipeline.
        per_row_bytes = 2 * (2 * (Wx + Wy) * itemsize + 512)
        budget = 10 * 1024 * 1024   # fits default scoped VMEM on v5e/v6e/v7x
        tile_rows = max(8, min(4096, (budget // per_row_bytes) // 8 * 8))
    if R <= tile_rows:
        tile_rows = R               # single full-extent tile (always legal)
    num_tiles = -(-R // tile_rows)

    kernel = _make_kernel(R, tile_rows, use_target_weight)

    row_specs = [
        pl.BlockSpec((tile_rows, Wx), lambda i: (i, 0)),
        pl.BlockSpec((tile_rows, Wy), lambda i: (i, 0)),
        pl.BlockSpec((tile_rows, Wx), lambda i: (i, 0)),
        pl.BlockSpec((tile_rows, Wy), lambda i: (i, 0)),
    ]
    if use_target_weight:
        w_col = target_weight.reshape(R, 1)
        in_specs = [pl.BlockSpec((tile_rows, 1), lambda i: (i, 0))] + row_specs
        args = (w_col, ox, oy, tx, ty)
    else:
        in_specs = row_specs
        args = (ox, oy, tx, ty)

    partials = pl.pallas_call(
        kernel,
        out_shape=jax.ShapeDtypeStruct((num_tiles, 128), jnp.float32),
        grid_spec=pltpu.PrefetchScalarGridSpec(
            num_scalar_prefetch=0,
            grid=(num_tiles,),
            in_specs=in_specs,
            out_specs=pl.BlockSpec((1, 128), lambda i: (i, 0)),
        ),
        compiler_params=pltpu.CompilerParams(
            dimension_semantics=("parallel",)),
    )(*args)

    # Tiny epilogue: sum the per-tile partials and apply the 1/(N*K) scaling.
    return jnp.sum(partials[:, 0]) / jnp.float32(R)


def _reference(output_x, output_y, target_x, target_y, target_weight):
    """Pure-JAX transcription of the PyTorch forward, for validation."""
    def crit(dec, lab):
        scores = jax.nn.log_softmax(dec, axis=1)
        safe_log = jnp.log(jnp.where(lab > 0, lab, 1.0))
        kl = jnp.where(lab > 0, lab * (safe_log - scores), 0.0)
        return jnp.mean(kl, axis=1)

    K = output_x.shape[1]
    loss = jnp.float32(0.0)
    for idx in range(K):
        w = target_weight[:, idx]
        loss += jnp.mean(crit(output_x[:, idx], target_x[:, idx]) * w)
        loss += jnp.mean(crit(output_y[:, idx], target_y[:, idx]) * w)
    return loss / K


if __name__ == "__main__":
    key = jax.random.PRNGKey(0)
    N, K, Wx, Wy = 4, 8, 256, 256

    k1, k2, k3, k4, k5 = jax.random.split(key, 5)
    output_x = jax.random.normal(k1, (N, K, Wx), jnp.float32)
    output_y = jax.random.normal(k2, (N, K, Wy), jnp.float32)
    # SimCC targets are per-joint probability distributions over bins.
    target_x = jax.nn.softmax(2.0 * jax.random.normal(k3, (N, K, Wx), jnp.float32), axis=-1)
    target_y = jax.nn.softmax(2.0 * jax.random.normal(k4, (N, K, Wy), jnp.float32), axis=-1)
    target_weight = jax.random.uniform(k5, (N, K), jnp.float32)

    # 1) Main path: all N*K = 32 rows fused into one tile.
    loss = jax.block_until_ready(
        kl_discret_loss_simcc(output_x, output_y, target_x, target_y,
                              target_weight, use_target_weight=True))
    ref = jax.block_until_ready(
        _reference(output_x, output_y, target_x, target_y, target_weight))
    assert jnp.abs(loss - ref) < 1e-5 * (1.0 + jnp.abs(ref)), (loss, ref)

    # 2) Multi-tile path with a ragged last tile (R = 21 rows, 8-row tiles).
    N2, K2 = 3, 7
    j1, j2, j3, j4, j5 = jax.random.split(jax.random.PRNGKey(1), 5)
    ox2 = jax.random.normal(j1, (N2, K2, Wx), jnp.float32)
    oy2 = jax.random.normal(j2, (N2, K2, Wy), jnp.float32)
    tx2 = jax.nn.softmax(2.0 * jax.random.normal(j3, (N2, K2, Wx), jnp.float32), axis=-1)
    ty2 = jax.nn.softmax(2.0 * jax.random.normal(j4, (N2, K2, Wy), jnp.float32), axis=-1)
    tw2 = jax.random.uniform(j5, (N2, K2), jnp.float32)

    loss2 = jax.block_until_ready(
        kl_discret_loss_simcc(ox2, oy2, tx2, ty2, tw2,
                              use_target_weight=True, tile_rows=8))
    ref2 = jax.block_until_ready(_reference(ox2, oy2, tx2, ty2, tw2))
    assert jnp.abs(loss2 - ref2) < 1e-5 * (1.0 + jnp.abs(ref2)), (loss2, ref2)

    # 3) use_target_weight=False variant (no weight input compiled at all).
    loss3 = jax.block_until_ready(
        kl_discret_loss_simcc(ox2, oy2, tx2, ty2, None,
                              use_target_weight=False, tile_rows=8))
    ref3 = jax.block_until_ready(
        _reference(ox2, oy2, tx2, ty2, jnp.ones((N2, K2), jnp.float32)))
    assert jnp.abs(loss3 - ref3) < 1e-5 * (1.0 + jnp.abs(ref3)), (loss3, ref3)

    print("KERNEL_OK")
</pallas_src>

<mosaic_0001>
module attributes {stable_mosaic.version = 11 : i64} {
  func.func @kernel(%arg0: i32, %arg1: memref<32x1xf32, #tpu.memory_space<vmem>>, %arg2: memref<32x256xf32, #tpu.memory_space<vmem>>, %arg3: memref<32x256xf32, #tpu.memory_space<vmem>>, %arg4: memref<32x256xf32, #tpu.memory_space<vmem>>, %arg5: memref<32x256xf32, #tpu.memory_space<vmem>>, %arg6: memref<1x128xf32, #tpu.memory_space<vmem>>) attributes {dimension_semantics = [#tpu.dimension_semantics<parallel>], iteration_bounds = array<i64: 1>, scalar_prefetch = 0 : i64, scratch_operands = 0 : i64, tpu.core_type = #tpu.core_type<tc>, window_params = [{transform_indices = @transform_0, window_bounds = array<i64: 32, 1>}, {transform_indices = @transform_1, window_bounds = array<i64: 32, 256>}, {transform_indices = @transform_2, window_bounds = array<i64: 32, 256>}, {transform_indices = @transform_3, window_bounds = array<i64: 32, 256>}, {transform_indices = @transform_4, window_bounds = array<i64: 32, 256>}, {transform_indices = @transform_5, window_bounds = array<i64: 1, 128>}]} {
    %c0 = arith.constant 0 : index
    %c0_0 = arith.constant 0 : index
    %0 = vector.load %arg2[%c0, %c0_0] : memref<32x256xf32, #tpu.memory_space<vmem>>, vector<32x256xf32>
    %c0_1 = arith.constant 0 : index
    %c0_2 = arith.constant 0 : index
    %1 = vector.load %arg4[%c0_1, %c0_2] : memref<32x256xf32, #tpu.memory_space<vmem>>, vector<32x256xf32>
    %cst = arith.constant dense<0xFF800000> : vector<32xf32>
    %2 = vector.multi_reduction <maximumf>, %0, %cst [1] : vector<32x256xf32> to vector<32xf32>
    %3 = vector.shape_cast %2 : vector<32xf32> to vector<32x1xf32>
    %4 = vector.broadcast %3 : vector<32x1xf32> to vector<32x256xf32>
    %5 = arith.subf %0, %4 : vector<32x256xf32>
    %6 = math.exp %5 : vector<32x256xf32>
    %cst_3 = arith.constant dense<0.000000e+00> : vector<32xf32>
    %7 = vector.multi_reduction <add>, %6, %cst_3 [1] : vector<32x256xf32> to vector<32xf32>
    %8 = vector.shape_cast %7 : vector<32xf32> to vector<32x1xf32>
    %9 = math.log %8 : vector<32x1xf32>
    %10 = vector.broadcast %9 : vector<32x1xf32> to vector<32x256xf32>
    %11 = arith.subf %5, %10 : vector<32x256xf32>
    %cst_4 = arith.constant 0.000000e+00 : f32
    %12 = vector.broadcast %cst_4 : f32 to vector<32x256xf32>
    %13 = arith.cmpf ogt, %1, %12 : vector<32x256xf32>
    %14 = math.log %1 : vector<32x256xf32>
    %cst_5 = arith.constant 0.000000e+00 : f32
    %15 = vector.broadcast %cst_5 : f32 to vector<32x256xf32>
    %16 = arith.select %13, %14, %15 : vector<32x256xi1>, vector<32x256xf32>
    %17 = arith.subf %16, %11 : vector<32x256xf32>
    %18 = arith.mulf %1, %17 : vector<32x256xf32>
    %cst_6 = arith.constant dense<0.000000e+00> : vector<32xf32>
    %19 = vector.multi_reduction <add>, %18, %cst_6 [1] : vector<32x256xf32> to vector<32xf32>
    %20 = vector.shape_cast %19 : vector<32xf32> to vector<32x1xf32>
    %cst_7 = arith.constant 2.560000e+02 : f32
    %21 = vector.broadcast %cst_7 : f32 to vector<32x1xf32>
    %22 = arith.divf %20, %21 : vector<32x1xf32>
    %c0_8 = arith.constant 0 : index
    %c0_9 = arith.constant 0 : index
    %23 = vector.load %arg3[%c0_8, %c0_9] : memref<32x256xf32, #tpu.memory_space<vmem>>, vector<32x256xf32>
    %c0_10 = arith.constant 0 : index
    %c0_11 = arith.constant 0 : index
    %24 = vector.load %arg5[%c0_10, %c0_11] : memref<32x256xf32, #tpu.memory_space<vmem>>, vector<32x256xf32>
    %cst_12 = arith.constant dense<0xFF800000> : vector<32xf32>
    %25 = vector.multi_reduction <maximumf>, %23, %cst_12 [1] : vector<32x256xf32> to vector<32xf32>
    %26 = vector.shape_cast %25 : vector<32xf32> to vector<32x1xf32>
    %27 = vector.broadcast %26 : vector<32x1xf32> to vector<32x256xf32>
    %28 = arith.subf %23, %27 : vector<32x256xf32>
    %29 = math.exp %28 : vector<32x256xf32>
    %cst_13 = arith.constant dense<0.000000e+00> : vector<32xf32>
    %30 = vector.multi_reduction <add>, %29, %cst_13 [1] : vector<32x256xf32> to vector<32xf32>
    %31 = vector.shape_cast %30 : vector<32xf32> to vector<32x1xf32>
    %32 = math.log %31 : vector<32x1xf32>
    %33 = vector.broadcast %32 : vector<32x1xf32> to vector<32x256xf32>
    %34 = arith.subf %28, %33 : vector<32x256xf32>
    %cst_14 = arith.constant 0.000000e+00 : f32
    %35 = vector.broadcast %cst_14 : f32 to vector<32x256xf32>
    %36 = arith.cmpf ogt, %24, %35 : vector<32x256xf32>
    %37 = math.log %24 : vector<32x256xf32>
    %cst_15 = arith.constant 0.000000e+00 : f32
    %38 = vector.broadcast %cst_15 : f32 to vector<32x256xf32>
    %39 = arith.select %36, %37, %38 : vector<32x256xi1>, vector<32x256xf32>
    %40 = arith.subf %39, %34 : vector<32x256xf32>
    %41 = arith.mulf %24, %40 : vector<32x256xf32>
    %cst_16 = arith.constant dense<0.000000e+00> : vector<32xf32>
    %42 = vector.multi_reduction <add>, %41, %cst_16 [1] : vector<32x256xf32> to vector<32xf32>
    %43 = vector.shape_cast %42 : vector<32xf32> to vector<32x1xf32>
    %cst_17 = arith.constant 2.560000e+02 : f32
    %44 = vector.broadcast %cst_17 : f32 to vector<32x1xf32>
    %45 = arith.divf %43, %44 : vector<32x1xf32>
    %46 = arith.addf %22, %45 : vector<32x1xf32>
    %c0_18 = arith.constant 0 : index
    %c0_19 = arith.constant 0 : index
    %47 = vector.load %arg1[%c0_18, %c0_19] : memref<32x1xf32, #tpu.memory_space<vmem>>, vector<32x1xf32>
    %48 = arith.mulf %46, %47 : vector<32x1xf32>
    %c32_i32 = arith.constant 32 : i32
    %49 = arith.muli %arg0, %c32_i32 : i32
    %50 = tpu.iota {dimensions = array<i32: 0>} : vector<32x1xi32>
    %51 = vector.broadcast %49 : i32 to vector<32x1xi32>
    %52 = arith.addi %51, %50 : vector<32x1xi32>
    %c32_i32_20 = arith.constant 32 : i32
    %53 = vector.broadcast %c32_i32_20 : i32 to vector<32x1xi32>
    %54 = arith.cmpi slt, %52, %53 : vector<32x1xi32>
    %cst_21 = arith.constant 0.000000e+00 : f32
    %55 = vector.broadcast %cst_21 : f32 to vector<32x1xf32>
    %56 = arith.select %54, %48, %55 : vector<32x1xi1>, vector<32x1xf32>
    %cst_22 = arith.constant dense<0.000000e+00> : vector<1xf32>
    %57 = vector.multi_reduction <add>, %56, %cst_22 [0] : vector<32x1xf32> to vector<1xf32>
    %58 = vector.shape_cast %57 : vector<1xf32> to vector<1x1xf32>
    %59 = vector.shape_cast %58 : vector<1x1xf32> to vector<1x1xf32>
    %60 = vector.broadcast %59 : vector<1x1xf32> to vector<1x128xf32>
    %c0_23 = arith.constant 0 : index
    %c0_24 = arith.constant 0 : index
    %61 = vector.load %arg6[%c0_23, %c0_24] : memref<1x128xf32, #tpu.memory_space<vmem>>, vector<1x128xf32>
    tpu.vector_store %arg6[%c0_23, %c0_24], %60 {strides = array<i32>} : memref<1x128xf32, #tpu.memory_space<vmem>>, vector<1x128xf32>,
    return
  }
  func.func @transform_0(%arg0: i32) -> (i32, i32) {
    %c0_i32 = arith.constant 0 : i32
    %c0_i32_0 = arith.constant 0 : i32
    return %arg0, %c0_i32 : i32, i32
  }
  func.func @transform_1(%arg0: i32) -> (i32, i32) {
    %c0_i32 = arith.constant 0 : i32
    %c0_i32_0 = arith.constant 0 : i32
    return %arg0, %c0_i32 : i32, i32
  }
  func.func @transform_2(%arg0: i32) -> (i32, i32) {
    %c0_i32 = arith.constant 0 : i32
    %c0_i32_0 = arith.constant 0 : i32
    return %arg0, %c0_i32 : i32, i32
  }
  func.func @transform_3(%arg0: i32) -> (i32, i32) {
    %c0_i32 = arith.constant 0 : i32
    %c0_i32_0 = arith.constant 0 : i32
    return %arg0, %c0_i32 : i32, i32
  }
  func.func @transform_4(%arg0: i32) -> (i32, i32) {
    %c0_i32 = arith.constant 0 : i32
    %c0_i32_0 = arith.constant 0 : i32
    return %arg0, %c0_i32 : i32, i32
  }
  func.func @transform_5(%arg0: i32) -> (i32, i32) {
    %c0_i32 = arith.constant 0 : i32
    %c0_i32_0 = arith.constant 0 : i32
    return %arg0, %c0_i32 : i32, i32
  }
}

</mosaic_0001>

<llo_original>
// kernel: tpu_custom_call.1
$region0: #{tpu_custom_call.1}
  #allocation0 [shape = 'u32[]', space=smem, size = 0x4, offset = 0x4, fixed_abs, tag = 'smem constant byte address 0x4 - core index']
  #allocation1 [shape = 'u32[144,128]{1,0:T(1,128)}', space=vmem, size = 0x12000, scoped, tag = 'internal scratch']
  %s0 = inlined_call_operand.vmem [shape: f32[32,1], index: 0, kind: input, shape index: {}]
  %s1 = inlined_call_operand.hbm [shape: f32[32,256], index: 1, kind: input, shape index: {}]
  %s2 = inlined_call_operand.hbm [shape: f32[32,256], index: 2, kind: input, shape index: {}]
  %s3 = inlined_call_operand.hbm [shape: f32[32,256], index: 3, kind: input, shape index: {}]
  %s4 = inlined_call_operand.hbm [shape: f32[32,256], index: 4, kind: input, shape index: {}]
  %s5 = inlined_call_operand.hbm [shape: f32[1,128], index: 5, kind: output, shape index: {}]
  %s6 = sld [smem:[#allocation0]]
  $region46: #{tpu_custom_call.1} parent=0
    _
  %s8 = ssub.s32 1, %s6
  %s9 = scalar_select 0, %s8, %s6
  $region1: #{tpu_custom_call.1} parent=0
    #allocation2 [shape = 'u8[32768]{0}', space=vmem, size = 0x8000, scoped, tag = 'input window, operand 1, single buffered']
    #allocation3 [shape = 's32[1]{0}', space=sflag, size = 0x4, scoped, tag = 'scoped memory for tpu_custom_call.1']
    #allocation4 [shape = 's32[1]{0}', space=sflag, size = 0x4, scoped, tag = 'scoped memory for tpu_custom_call.1']
    #allocation5 [shape = 'u8[32768]{0}', space=vmem, size = 0x8000, scoped, tag = 'input window, operand 2, single buffered']
    #allocation6 [shape = 's32[1]{0}', space=sflag, size = 0x4, scoped, tag = 'scoped memory for tpu_custom_call.1']
    #allocation7 [shape = 'u8[32768]{0}', space=vmem, size = 0x8000, scoped, tag = 'input window, operand 3, single buffered']
    #allocation8 [shape = 'u8[32768]{0}', space=vmem, size = 0x8000, scoped, tag = 'input window, operand 4, single buffered']
    #allocation9 [shape = 's32[1]{0}', space=sflag, size = 0x4, scoped, tag = 'scoped memory for tpu_custom_call.1']
    #allocation10 [shape = 'u8[512]{0}', space=vmem, size = 0x400, scoped, tag = 'output window, operand 0, single buffered']
    %10 = vsyncpa [#allocation3], 0
    %11 = vsyncpa [#allocation6], 0
    %12 = vsyncpa [#allocation9], 0
    %13 = vsyncpa [#allocation4], 0
    // Predicated region
    $region2: #{tpu_custom_call.1} parent=1 // pred_check
      _
    $region3: #{tpu_custom_call.1} parent=1 // pred_check_branch
      %15 = sbr.rel (0) target = $region5
    $region4: #{tpu_custom_call.1} parent=1 // pred_region
      _
    $region5: #{tpu_custom_call.1} parent=1 // pred_fallthru
      _
    // Predicated region
    $region6: #{tpu_custom_call.1} parent=1 // pred_check
      _
    $region7: #{tpu_custom_call.1} parent=1 // pred_check_branch
      %17 = sbr.rel (0) target = $region9
    $region8: #{tpu_custom_call.1} parent=1 // pred_region
      %s19 = ssub.s32 1024, 1024
      %20 = vsyncadd [#allocation3], %s19
      %s21 = sshll.u32 [#allocation2], 4
      %s22 = int_to_ptr.vmem [resolvable:$true] %s21
      %27 = dma.hbm_to_vmem [thread:$0]  %s1, 1024, %s22, [#allocation3], 256, 256, 16
    $region9: #{tpu_custom_call.1} parent=1 // pred_fallthru
      _
    // Predicated region
    $region10: #{tpu_custom_call.1} parent=1 // pred_check
      _
    $region11: #{tpu_custom_call.1} parent=1 // pred_check_branch
      %29 = sbr.rel (0) target = $region13
    $region12: #{tpu_custom_call.1} parent=1 // pred_region
      %s31 = ssub.s32 1024, 1024
      %32 = vsyncadd [#allocation6], %s31
      %s33 = sshll.u32 [#allocation5], 4
      %s34 = int_to_ptr.vmem [resolvable:$true] %s33
      %39 = dma.hbm_to_vmem [thread:$0]  %s2, 1024, %s34, [#allocation6], 256, 256, 16
    $region13: #{tpu_custom_call.1} parent=1 // pred_fallthru
      _
    // Predicated region
    $region14: #{tpu_custom_call.1} parent=1 // pred_check
      _
    $region15: #{tpu_custom_call.1} parent=1 // pred_check_branch
      %41 = sbr.rel (0) target = $region17
    $region16: #{tpu_custom_call.1} parent=1 // pred_region
      %s43 = ssub.s32 1024, 1024
      %44 = vsyncadd [#allocation6], %s43
      %s45 = sshll.u32 [#allocation7], 4
      %s46 = int_to_ptr.vmem [resolvable:$true] %s45
      %51 = dma.hbm_to_vmem [thread:$0]  %s3, 1024, %s46, [#allocation6], 256, 256, 16
    $region17: #{tpu_custom_call.1} parent=1 // pred_fallthru
      _
    // Predicated region
    $region18: #{tpu_custom_call.1} parent=1 // pred_check
      _
    $region19: #{tpu_custom_call.1} parent=1 // pred_check_branch
      %53 = sbr.rel (0) target = $region21
    $region20: #{tpu_custom_call.1} parent=1 // pred_region
      %s55 = ssub.s32 1024, 1024
      %56 = vsyncadd [#allocation9], %s55
      %s57 = sshll.u32 [#allocation8], 4
      %s58 = int_to_ptr.vmem [resolvable:$true] %s57
      %63 = dma.hbm_to_vmem [thread:$0]  %s4, 1024, %s58, [#allocation9], 256, 256, 16
    $region21: #{tpu_custom_call.1} parent=1 // pred_fallthru
      _
    // Predicated region
    $region22: #{tpu_custom_call.1} parent=1 // pred_check
      _
    $region23: #{tpu_custom_call.1} parent=1 // pred_check_branch
      %65 = sbr.rel (0) target = $region25
    $region24: #{tpu_custom_call.1} parent=1 // pred_region
      %66 = dma.done [#allocation3], 1024
    $region25: #{tpu_custom_call.1} parent=1 // pred_fallthru
      _
    // Predicated region
    $region26: #{tpu_custom_call.1} parent=1 // pred_check
      _
    $region27: #{tpu_custom_call.1} parent=1 // pred_check_branch
      %68 = sbr.rel (0) target = $region29
    $region28: #{tpu_custom_call.1} parent=1 // pred_region
      %69 = dma.done [#allocation6], 1024
    $region29: #{tpu_custom_call.1} parent=1 // pred_fallthru
      _
    // Predicated region
    $region30: #{tpu_custom_call.1} parent=1 // pred_check
      _
    $region31: #{tpu_custom_call.1} parent=1 // pred_check_branch
      %71 = sbr.rel (0) target = $region33
    $region32: #{tpu_custom_call.1} parent=1 // pred_region
      %72 = dma.done [#allocation6], 1024
    $region33: #{tpu_custom_call.1} parent=1 // pred_fallthru
      _
    // Predicated region
    $region34: #{tpu_custom_call.1} parent=1 // pred_check
      _
    $region35: #{tpu_custom_call.1} parent=1 // pred_check_branch
      %74 = sbr.rel (0) target = $region37
    $region36: #{tpu_custom_call.1} parent=1 // pred_region
      %75 = dma.done [#allocation9], 1024
    $region37: #{tpu_custom_call.1} parent=1 // pred_fallthru
      _
    %v76 = vld [vmem:[#allocation2] sm:$0xff]
    %v77 = vld [vmem:[#allocation2 + $0x8] sm:$0xff]
    %v78 = vld [vmem:[#allocation2 + $0x10] sm:$0xff]
    %v79 = vld [vmem:[#allocation2 + $0x18] sm:$0xff]
    %v80 = vld [vmem:[#allocation2 + $0x20] sm:$0xff]
    %v81 = vld [vmem:[#allocation2 + $0x28] sm:$0xff]
    %v82 = vld [vmem:[#allocation2 + $0x30] sm:$0xff]
    %v83 = vld [vmem:[#allocation2 + $0x38] sm:$0xff]
    %v84 = vld [vmem:[#allocation7] sm:$0xff]
    %v85 = vld [vmem:[#allocation7 + $0x8] sm:$0xff]
    %v86 = vld [vmem:[#allocation7 + $0x10] sm:$0xff]
    %v87 = vld [vmem:[#allocation7 + $0x18] sm:$0xff]
    %v88 = vld [vmem:[#allocation7 + $0x20] sm:$0xff]
    %v89 = vld [vmem:[#allocation7 + $0x28] sm:$0xff]
    %v90 = vld [vmem:[#allocation7 + $0x30] sm:$0xff]
    %v91 = vld [vmem:[#allocation7 + $0x38] sm:$0xff]
    %v92 = vmax.f32 %v76, %v77
    %93 = vmax.xlane.f32.xlu0 %v92
    %v94 = vpop.xlane.xlu0 %93
    %v95 = vmax.f32 %v78, %v79
    %96 = vmax.xlane.f32.xlu0 %v95
    %v97 = vpop.xlane.xlu0 %96
    %v98 = vmax.f32 %v80, %v81
    %99 = vmax.xlane.f32.xlu0 %v98
    %v100 = vpop.xlane.xlu0 %99
    %v101 = vmax.f32 %v82, %v83
    %102 = vmax.xlane.f32.xlu0 %v101
    %v103 = vpop.xlane.xlu0 %102
    %v104 = vsub.f32 %v76, %v94
    %v105 = vsub.f32 %v77, %v94
    %v106 = vsub.f32 %v78, %v97
    %v107 = vsub.f32 %v79, %v97
    %v108 = vsub.f32 %v80, %v100
    %v109 = vsub.f32 %v81, %v100
    %v110 = vsub.f32 %v82, %v103
    %v111 = vsub.f32 %v83, %v103
    %v112 = vmul.f32 %v104, 1.442695
    %v113 = vpow.pop %v112
    %v114 = vmul.f32 %v105, 1.442695
    %v115 = vpow.pop %v114
    %v116 = vmul.f32 %v106, 1.442695
    %v117 = vpow.pop %v116
    %v118 = vmul.f32 %v107, 1.442695
    %v119 = vpow.pop %v118
    %v120 = vmul.f32 %v108, 1.442695
    %v121 = vpow.pop %v120
    %v122 = vmul.f32 %v109, 1.442695
    %v123 = vpow.pop %v122
    %v124 = vmul.f32 %v110, 1.442695
    %v125 = vpow.pop %v124
    %v126 = vmul.f32 %v111, 1.442695
    %v127 = vpow.pop %v126
    %v128 = vadd.f32 %v113, %v115
    %129 = vadd.xlane.f32.xlu0 %v128
    %v130 = vpop.xlane.xlu0 %129
    %v131 = vadd.f32 %v117, %v119
    %132 = vadd.xlane.f32.xlu0 %v131
    %v133 = vpop.xlane.xlu0 %132
    %v134 = vadd.f32 %v121, %v123
    %135 = vadd.xlane.f32.xlu0 %v134
    %v136 = vpop.xlane.xlu0 %135
    %v137 = vadd.f32 %v125, %v127
    %138 = vadd.xlane.f32.xlu0 %v137
    %v139 = vpop.xlane.xlu0 %138
    %v140 = vlog2.pop %v130
    %v141 = vmul.f32 %v140, 0.6931472
    %v142 = vlog2.pop %v133
    %v143 = vmul.f32 %v142, 0.6931472
    %v144 = vlog2.pop %v136
    %v145 = vmul.f32 %v144, 0.6931472
    %v146 = vlog2.pop %v139
    %v147 = vmul.f32 %v146, 0.6931472
    %v148 = vsub.f32 %v104, %v141
    %v149 = vsub.f32 %v105, %v141
    %v150 = vsub.f32 %v106, %v143
    %v151 = vsub.f32 %v107, %v143
    %v152 = vsub.f32 %v108, %v145
    %v153 = vsub.f32 %v109, %v145
    %v154 = vsub.f32 %v110, %v147
    %v155 = vsub.f32 %v111, %v147
    %vm156 = vcmp.gt.f32.partialorder %v84, 0.0
    %vm157 = vcmp.gt.f32.partialorder %v85, 0.0
    %vm158 = vcmp.gt.f32.partialorder %v86, 0.0
    %vm159 = vcmp.gt.f32.partialorder %v87, 0.0
    %vm160 = vcmp.gt.f32.partialorder %v88, 0.0
    %vm161 = vcmp.gt.f32.partialorder %v89, 0.0
    %vm162 = vcmp.gt.f32.partialorder %v90, 0.0
    %vm163 = vcmp.gt.f32.partialorder %v91, 0.0
    %v164 = vlog2.pop %v84
    %v165 = vmul.f32 %v164, 0.6931472
    %v166 = vlog2.pop %v85
    %v167 = vmul.f32 %v166, 0.6931472
    %v168 = vlog2.pop %v86
    %v169 = vmul.f32 %v168, 0.6931472
    %v170 = vlog2.pop %v87
    %v171 = vmul.f32 %v170, 0.6931472
    %v172 = vlog2.pop %v88
    %v173 = vmul.f32 %v172, 0.6931472
    %v174 = vlog2.pop %v89
    %v175 = vmul.f32 %v174, 0.6931472
    %v176 = vlog2.pop %v90
    %v177 = vmul.f32 %v176, 0.6931472
    %v178 = vlog2.pop %v91
    %v179 = vmul.f32 %v178, 0.6931472
    %v180 = vsel %vm156, %v165, 0.0
    %v181 = vsel %vm157, %v167, 0.0
    %v182 = vsel %vm158, %v169, 0.0
    %v183 = vsel %vm159, %v171, 0.0
    %v184 = vsel %vm160, %v173, 0.0
    %v185 = vsel %vm161, %v175, 0.0
    %v186 = vsel %vm162, %v177, 0.0
    %v187 = vsel %vm163, %v179, 0.0
    %v188 = vsub.f32 %v180, %v148
    %v189 = vsub.f32 %v181, %v149
    %v190 = vsub.f32 %v182, %v150
    %v191 = vsub.f32 %v183, %v151
    %v192 = vsub.f32 %v184, %v152
    %v193 = vsub.f32 %v185, %v153
    %v194 = vsub.f32 %v186, %v154
    %v195 = vsub.f32 %v187, %v155
    %v196 = vmul.f32 %v84, %v188
    %v197 = vmul.f32 %v85, %v189
    %v198 = vmul.f32 %v86, %v190
    %v199 = vmul.f32 %v87, %v191
    %v200 = vmul.f32 %v88, %v192
    %v201 = vmul.f32 %v89, %v193
    %v202 = vmul.f32 %v90, %v194
    %v203 = vmul.f32 %v91, %v195
    %v204 = vadd.f32 %v196, %v197
    %205 = vadd.xlane.f32.xlu0 %v204
    %v206 = vpop.xlane.xlu0 %205
    %v207 = vadd.f32 %v198, %v199
    %208 = vadd.xlane.f32.xlu0 %v207
    %v209 = vpop.xlane.xlu0 %208
    %v210 = vadd.f32 %v200, %v201
    %211 = vadd.xlane.f32.xlu0 %v210
    %v212 = vpop.xlane.xlu0 %211
    %v213 = vadd.f32 %v202, %v203
    %214 = vadd.xlane.f32.xlu0 %v213
    %v215 = vpop.xlane.xlu0 %214
    %v216 = vrcp.pop 256.0
    %v217 = vmul.f32 %v206, %v216
    %v218 = vmul.f32 %v209, %v216
    %v219 = vmul.f32 %v212, %v216
    %v220 = vmul.f32 %v215, %v216
    %v221 = vld [vmem:[#allocation5] sm:$0xff]
    %v222 = vld [vmem:[#allocation5 + $0x8] sm:$0xff]
    %v223 = vld [vmem:[#allocation5 + $0x10] sm:$0xff]
    %v224 = vld [vmem:[#allocation5 + $0x18] sm:$0xff]
    %v225 = vld [vmem:[#allocation5 + $0x20] sm:$0xff]
    %v226 = vld [vmem:[#allocation5 + $0x28] sm:$0xff]
    %v227 = vld [vmem:[#allocation5 + $0x30] sm:$0xff]
    %v228 = vld [vmem:[#allocation5 + $0x38] sm:$0xff]
    %v229 = vld [vmem:[#allocation8] sm:$0xff]
    %v230 = vld [vmem:[#allocation8 + $0x8] sm:$0xff]
    %v231 = vld [vmem:[#allocation8 + $0x10] sm:$0xff]
    %v232 = vld [vmem:[#allocation8 + $0x18] sm:$0xff]
    %v233 = vld [vmem:[#allocation8 + $0x20] sm:$0xff]
    %v234 = vld [vmem:[#allocation8 + $0x28] sm:$0xff]
    %v235 = vld [vmem:[#allocation8 + $0x30] sm:$0xff]
    %v236 = vld [vmem:[#allocation8 + $0x38] sm:$0xff]
    %v237 = vmax.f32 %v221, %v222
    %238 = vmax.xlane.f32.xlu0 %v237
    %v239 = vpop.xlane.xlu0 %238
    %v240 = vmax.f32 %v223, %v224
    %241 = vmax.xlane.f32.xlu0 %v240
    %v242 = vpop.xlane.xlu0 %241
    %v243 = vmax.f32 %v225, %v226
    %244 = vmax.xlane.f32.xlu0 %v243
    %v245 = vpop.xlane.xlu0 %244
    %v246 = vmax.f32 %v227, %v228
    %247 = vmax.xlane.f32.xlu0 %v246
    %v248 = vpop.xlane.xlu0 %247
    %v249 = vsub.f32 %v221, %v239
    %v250 = vsub.f32 %v222, %v239
    %v251 = vsub.f32 %v223, %v242
    %v252 = vsub.f32 %v224, %v242
    %v253 = vsub.f32 %v225, %v245
    %v254 = vsub.f32 %v226, %v245
    %v255 = vsub.f32 %v227, %v248
    %v256 = vsub.f32 %v228, %v248
    %v257 = vmul.f32 %v249, 1.442695
    %v258 = vpow.pop %v257
    %v259 = vmul.f32 %v250, 1.442695
    %v260 = vpow.pop %v259
    %v261 = vmul.f32 %v251, 1.442695
    %v262 = vpow.pop %v261
    %v263 = vmul.f32 %v252, 1.442695
    %v264 = vpow.pop %v263
    %v265 = vmul.f32 %v253, 1.442695
    %v266 = vpow.pop %v265
    %v267 = vmul.f32 %v254, 1.442695
    %v268 = vpow.pop %v267
    %v269 = vmul.f32 %v255, 1.442695
    %v270 = vpow.pop %v269
    %v271 = vmul.f32 %v256, 1.442695
    %v272 = vpow.pop %v271
    %v273 = vadd.f32 %v258, %v260
    %274 = vadd.xlane.f32.xlu0 %v273
    %v275 = vpop.xlane.xlu0 %274
    %v276 = vadd.f32 %v262, %v264
    %277 = vadd.xlane.f32.xlu0 %v276
    %v278 = vpop.xlane.xlu0 %277
    %v279 = vadd.f32 %v266, %v268
    %280 = vadd.xlane.f32.xlu0 %v279
    %v281 = vpop.xlane.xlu0 %280
    %v282 = vadd.f32 %v270, %v272
    %283 = vadd.xlane.f32.xlu0 %v282
    %v284 = vpop.xlane.xlu0 %283
    %v285 = vlog2.pop %v275
    %v286 = vmul.f32 %v285, 0.6931472
    %v287 = vlog2.pop %v278
    %v288 = vmul.f32 %v287, 0.6931472
    %v289 = vlog2.pop %v281
    %v290 = vmul.f32 %v289, 0.6931472
    %v291 = vlog2.pop %v284
    %v292 = vmul.f32 %v291, 0.6931472
    %v293 = vsub.f32 %v249, %v286
    %v294 = vsub.f32 %v250, %v286
    %v295 = vsub.f32 %v251, %v288
    %v296 = vsub.f32 %v252, %v288
    %v297 = vsub.f32 %v253, %v290
    %v298 = vsub.f32 %v254, %v290
    %v299 = vsub.f32 %v255, %v292
    %v300 = vsub.f32 %v256, %v292
    %vm301 = vcmp.gt.f32.partialorder %v229, 0.0
    %vm302 = vcmp.gt.f32.partialorder %v230, 0.0
    %vm303 = vcmp.gt.f32.partialorder %v231, 0.0
    %vm304 = vcmp.gt.f32.partialorder %v232, 0.0
    %vm305 = vcmp.gt.f32.partialorder %v233, 0.0
    %vm306 = vcmp.gt.f32.partialorder %v234, 0.0
    %vm307 = vcmp.gt.f32.partialorder %v235, 0.0
    %vm308 = vcmp.gt.f32.partialorder %v236, 0.0
    %v309 = vlog2.pop %v229
    %v310 = vmul.f32 %v309, 0.6931472
    %v311 = vlog2.pop %v230
    %v312 = vmul.f32 %v311, 0.6931472
    %v313 = vlog2.pop %v231
    %v314 = vmul.f32 %v313, 0.6931472
    %v315 = vlog2.pop %v232
    %v316 = vmul.f32 %v315, 0.6931472
    %v317 = vlog2.pop %v233
    %v318 = vmul.f32 %v317, 0.6931472
    %v319 = vlog2.pop %v234
    %v320 = vmul.f32 %v319, 0.6931472
    %v321 = vlog2.pop %v235
    %v322 = vmul.f32 %v321, 0.6931472
    %v323 = vlog2.pop %v236
    %v324 = vmul.f32 %v323, 0.6931472
    %v325 = vsel %vm301, %v310, 0.0
    %v326 = vsel %vm302, %v312, 0.0
    %v327 = vsel %vm303, %v314, 0.0
    %v328 = vsel %vm304, %v316, 0.0
    %v329 = vsel %vm305, %v318, 0.0
    %v330 = vsel %vm306, %v320, 0.0
    %v331 = vsel %vm307, %v322, 0.0
    %v332 = vsel %vm308, %v324, 0.0
    %v333 = vsub.f32 %v325, %v293
    %v334 = vsub.f32 %v326, %v294
    %v335 = vsub.f32 %v327, %v295
    %v336 = vsub.f32 %v328, %v296
    %v337 = vsub.f32 %v329, %v297
    %v338 = vsub.f32 %v330, %v298
    %v339 = vsub.f32 %v331, %v299
    %v340 = vsub.f32 %v332, %v300
    %v341 = vmul.f32 %v229, %v333
    %v342 = vmul.f32 %v230, %v334
    %v343 = vmul.f32 %v231, %v335
    %v344 = vmul.f32 %v232, %v336
    %v345 = vmul.f32 %v233, %v337
    %v346 = vmul.f32 %v234, %v338
    %v347 = vmul.f32 %v235, %v339
    %v348 = vmul.f32 %v236, %v340
    %v349 = vadd.f32 %v341, %v342
    %350 = vadd.xlane.f32.xlu0 %v349
    %v351 = vpop.xlane.xlu0 %350
    %v352 = vadd.f32 %v343, %v344
    %353 = vadd.xlane.f32.xlu0 %v352
    %v354 = vpop.xlane.xlu0 %353
    %v355 = vadd.f32 %v345, %v346
    %356 = vadd.xlane.f32.xlu0 %v355
    %v357 = vpop.xlane.xlu0 %356
    %v358 = vadd.f32 %v347, %v348
    %359 = vadd.xlane.f32.xlu0 %v358
    %v360 = vpop.xlane.xlu0 %359
    %v361 = vmul.f32 %v351, %v216
    %v362 = vmul.f32 %v354, %v216
    %v363 = vmul.f32 %v357, %v216
    %v364 = vmul.f32 %v360, %v216
    %v365 = vadd.f32 %v217, %v361
    %v366 = vadd.f32 %v218, %v362
    %v367 = vadd.f32 %v219, %v363
    %v368 = vadd.f32 %v220, %v364
    %v369 = vld [vmem:[%s0] sm:$0xff]
    %v370 = vld [vmem:[%s0 + $0x8] sm:$0xff]
    %v371 = vld [vmem:[%s0 + $0x10] sm:$0xff]
    %v372 = vld [vmem:[%s0 + $0x18] sm:$0xff]
    %v373 = vmul.f32 %v365, %v369
    %v374 = vmul.f32 %v366, %v370
    %v375 = vmul.f32 %v367, %v371
    %v376 = vmul.f32 %v368, %v372
    %s377 = smul.u32 0, 32
    %v378 = vlaneseq
    %v379 = vshrl.u32 %v378, 7
    %v380 = vadd.s32 %v379, 8
    %v381 = vadd.s32 %v379, 16
    %v382 = vadd.s32 %v379, 24
    %v383 = vstv %s377
    %v384 = vadd.s32 %v383, %v379
    %v385 = vadd.s32 %v383, %v380
    %v386 = vadd.s32 %v383, %v381
    %v387 = vadd.s32 %v383, %v382
    %vm388 = vcmp.lt.s32.totalorder %v384, 32
    %vm389 = vcmp.lt.s32.totalorder %v385, 32
    %vm390 = vcmp.lt.s32.totalorder %v386, 32
    %vm391 = vcmp.lt.s32.totalorder %v387, 32
    %v392 = vsel %vm388, %v373, 0.0
    %v393 = vsel %vm389, %v374, 0.0
    %v394 = vsel %vm390, %v375, 0.0
    %v395 = vsel %vm391, %v376, 0.0
    %vm396 = vcmask 7168
    %v397 = vsel %vm396, %v392, 0.0
    %v398 = vsel %vm396, %v393, 0.0
    %v399 = vadd.f32 %v397, %v398
    %v400 = vsel %vm396, %v394, 0.0
    %v401 = vadd.f32 %v399, %v400
    %v402 = vsel %vm396, %v395, 0.0
    %v403 = vadd.f32 %v401, %v402
    %v404 = vrot.slane %v403, 4
    %v405 = vadd.f32 %v403, %v404
    %v406 = vrot.slane %v405, 2
    %v407 = vadd.f32 %v405, %v406
    %v408 = vrot.slane %v407, 1
    %v409 = vadd.f32 %v407, %v408
    %411 = vset.pattern.permute.xlu0 0
    %412 = vperm.xlu0 %411, %v409
    %v413 = vpop.permute.xlu0 %412
    %415 = vst [vmem:[#allocation10] sm:$0x1] %v413
    // Predicated region
    $region38: #{tpu_custom_call.1} parent=1 // pred_check
      _
    $region39: #{tpu_custom_call.1} parent=1 // pred_check_branch
      %417 = sbr.rel (0) target = $region41
    $region40: #{tpu_custom_call.1} parent=1 // pred_region
      %s419 = ssub.s32 16, 16
      %420 = vsyncadd [#allocation4], %s419
      %s422 = sshll.u32 [#allocation10], 4
      %s423 = int_to_ptr.vmem [resolvable:$true] %s422
      %425 = dma.vmem_to_hbm [thread:$0]  %s423, 16, %s5, [#allocation4]
    $region41: #{tpu_custom_call.1} parent=1 // pred_fallthru
      _
    // Predicated region
    $region42: #{tpu_custom_call.1} parent=1 // pred_check
      _
    $region43: #{tpu_custom_call.1} parent=1 // pred_check_branch
      %427 = sbr.rel (0) target = $region45
    $region44: #{tpu_custom_call.1} parent=1 // pred_region
      %428 = dma.done [#allocation4], 16
    $region45: #{tpu_custom_call.1} parent=1 // pred_fallthru
      _
    %429 = vsyncpa [#allocation3], 1
    %430 = vsyncpa [#allocation6], 1
    %431 = vsyncpa [#allocation9], 1
    %432 = vsyncpa [#allocation4], 1

</llo_original>
